<compile_context>
chip_gen: v5e
topology: v5e:2x2
jax: 0.10.0
libtpu: 0.0.40
codegen_flags: <defaults>
</compile_context>

<pallas_src>
import jax
import jax.numpy as jnp
from jax.experimental import pallas as pl
from jax.experimental.pallas import tpu as pltpu


_LANE_CANDIDATES = (4096, 2048, 1024, 512, 256, 128)  # lane-dense widths
_MAX_LANE_W = 4096
_TARGET_TILE_BYTES = 4 * 1024 * 1024   # per-buffer tile; x4 buffers ≈ 16 MiB VMEM
_VMEM_LIMIT_BYTES = 32 * 1024 * 1024   # fits every generation (v7x: 64 MiB phys)

# Sub-32-bit dtypes pack along sublanes: tile granularity per itemsize.
_SUBLANE_BY_ITEMSIZE = {8: 8, 4: 8, 2: 16, 1: 32}


def _copy_kernel(x_ref, o_ref):
    # Identity pass-through: one full-tile vector copy.
    o_ref[...] = x_ref[...]


def _as_2d(x: jax.Array) -> jax.Array:
    """Present x as a 2-D view, lane-dense (cols % 128 == 0) when possible."""
    total = x.size
    if total % 128 == 0:
        # Lane-dense reshape: unmasked full-lane vst (the biggest single lever).
        lane_w = next(w for w in _LANE_CANDIDATES if total % w == 0)
        return x.reshape(total // lane_w, lane_w)
    if x.ndim == 0:
        return x.reshape(1, 1)
    # Odd element count: keep the last dim as the lane axis, no padding.
    # Boundary blocks are masked by Pallas; traffic stays at the 2x floor.
    return x.reshape(-1, x.shape[-1])


def _pallas_copy_2d(x2d: jax.Array) -> jax.Array:
    rows, cols = x2d.shape
    dt = x2d.dtype
    itemsize = dt.itemsize
    sub = _SUBLANE_BY_ITEMSIZE.get(itemsize, 8)

    # Column tile: full extent (always legal) unless cols is a huge multiple
    # of 128, in which case tile it lane-dense.
    if cols % 128 == 0 and cols > _MAX_LANE_W:
        col_tile = _MAX_LANE_W
    else:
        col_tile = cols

    # Row tile: full extent when small (always legal), otherwise a multiple of
    # the dtype-aware sublane granularity capped by the per-buffer VMEM budget.
    if rows <= sub:
        row_tile = rows
    else:
        budget_rows = max(sub, (_TARGET_TILE_BYTES // (col_tile * itemsize)) // sub * sub)
        row_tile = min(budget_rows, (rows // sub) * sub)

    grid = (pl.cdiv(rows, row_tile), pl.cdiv(cols, col_tile))

    return pl.pallas_call(
        _copy_kernel,
        out_shape=jax.ShapeDtypeStruct((rows, cols), dt),
        grid_spec=pltpu.PrefetchScalarGridSpec(
            num_scalar_prefetch=0,
            grid=grid,
            in_specs=[pl.BlockSpec((row_tile, col_tile), lambda i, j: (i, j))],
            out_specs=pl.BlockSpec((row_tile, col_tile), lambda i, j: (i, j)),
        ),
        compiler_params=pltpu.CompilerParams(
            # Both axes independent -> shards across both TCs on v7x.
            dimension_semantics=("parallel", "parallel"),
            vmem_limit_bytes=_VMEM_LIMIT_BYTES,
        ),
    )(x2d)


@jax.jit
def fish_forward(x: jax.Array) -> jax.Array:
    """Pass-through forward for the abstract Fish module (identity)."""
    if x.size == 0:
        return x
    orig_shape = x.shape
    out2d = _pallas_copy_2d(_as_2d(x))
    return out2d.reshape(orig_shape)


if __name__ == "__main__":
    key = jax.random.PRNGKey(0)

    # Small NCHW input consistent with a typical image-model forward.
    x = jax.random.normal(key, (2, 4, 16, 16), dtype=jnp.float32)
    y = jax.block_until_ready(fish_forward(x))
    assert y.shape == x.shape
    assert y.dtype == x.dtype
    assert bool(jnp.all(y == x))

    # Odd element count (not % 128): unpadded masked-boundary path.
    x2 = jax.random.normal(jax.random.PRNGKey(0), (2, 3, 5, 7), dtype=jnp.float32)
    y2 = jax.block_until_ready(fish_forward(x2))
    assert y2.shape == x2.shape
    assert bool(jnp.all(y2 == x2))

    # Packed dtype (bf16): exercises the dtype-aware sublane granularity.
    x3 = jax.random.normal(jax.random.PRNGKey(0), (4, 8, 32), dtype=jnp.bfloat16)
    y3 = jax.block_until_ready(fish_forward(x3))
    assert y3.shape == x3.shape
    assert y3.dtype == x3.dtype
    assert bool(jnp.all(y3 == x3))

    print("KERNEL_OK")
</pallas_src>

<mosaic_0001>
module attributes {stable_mosaic.version = 11 : i64} {
  func.func @_copy_kernel(%arg0: i32, %arg1: i32, %arg2: memref<1x2048xf32, #tpu.memory_space<vmem>>, %arg3: memref<1x2048xf32, #tpu.memory_space<vmem>>) attributes {dimension_semantics = [#tpu.dimension_semantics<parallel>, #tpu.dimension_semantics<parallel>], iteration_bounds = array<i64: 1, 1>, scalar_prefetch = 0 : i64, scratch_operands = 0 : i64, tpu.core_type = #tpu.core_type<tc>, window_params = [{transform_indices = @transform_0, window_bounds = array<i64: 1, 2048>}, {transform_indices = @transform_1, window_bounds = array<i64: 1, 2048>}]} {
    %c0 = arith.constant 0 : index
    %c0_0 = arith.constant 0 : index
    %0 = vector.load %arg2[%c0, %c0_0] : memref<1x2048xf32, #tpu.memory_space<vmem>>, vector<1x2048xf32>
    %c0_1 = arith.constant 0 : index
    %c0_2 = arith.constant 0 : index
    %1 = vector.load %arg3[%c0_1, %c0_2] : memref<1x2048xf32, #tpu.memory_space<vmem>>, vector<1x2048xf32>
    tpu.vector_store %arg3[%c0_1, %c0_2], %0 {strides = array<i32>} : memref<1x2048xf32, #tpu.memory_space<vmem>>, vector<1x2048xf32>,
    return
  }
  func.func @transform_0(%arg0: i32, %arg1: i32) -> (i32, i32) {
    %c0_i32 = arith.constant 0 : i32
    return %arg0, %arg1 : i32, i32
  }
  func.func @transform_1(%arg0: i32, %arg1: i32) -> (i32, i32) {
    %c0_i32 = arith.constant 0 : i32
    return %arg0, %arg1 : i32, i32
  }
}

</mosaic_0001>

<llo_original>
// kernel: fish_forward.1
$region0: #{fish_forward.1}
  #allocation0 [shape = 'u32[]', space=smem, size = 0x4, offset = 0x4, fixed_abs, tag = 'smem constant byte address 0x4 - core index']
  #allocation1 [shape = 'u32[72,128]{1,0:T(1,128)}', space=vmem, size = 0x9000, scoped, tag = 'internal scratch']
  %s0 = inlined_call_operand.vmem [shape: f32[1,2048], index: 0, kind: input, shape index: {}]
  %s1 = inlined_call_operand.vmem [shape: f32[1,2048], index: 1, kind: output, shape index: {}]
  %s2 = sld [smem:[#allocation0]]
  $region14: #{fish_forward.1} parent=0
    _
  %s4 = ssub.s32 1, %s2
  %s5 = scalar_select 0, %s4, %s2
  // Predicated region
  $region2: #{fish_forward.1} parent=0 // pred_check
    _
  $region3: #{fish_forward.1} parent=0 // pred_check_branch
    %7 = sbr.rel (0) target = $region5
  $region4: #{fish_forward.1} parent=0 // pred_region
    _
  $region5: #{fish_forward.1} parent=0 // pred_fallthru
    _
  %v8 = vld [vmem:[%s0] sm:$0xff]
  %v9 = vld [vmem:[%s0 + $0x8] sm:$0xff]
  %10 = vst [vmem:[%s1] sm:$0xff] %v8
  %11 = vst [vmem:[%s1 + $0x8] sm:$0xff] %v9
  // Predicated region
  $region6: #{fish_forward.1} parent=0 // pred_check
    _
  $region7: #{fish_forward.1} parent=0 // pred_check_branch
    %13 = sbr.rel (0) target = $region9
  $region8: #{fish_forward.1} parent=0 // pred_region
    _
  $region9: #{fish_forward.1} parent=0 // pred_fallthru
    _
  // Predicated region
  $region10: #{fish_forward.1} parent=0 // pred_check
    _
  $region11: #{fish_forward.1} parent=0 // pred_check_branch
    %15 = sbr.rel (0) target = $region13
  $region12: #{fish_forward.1} parent=0 // pred_region
    _
  $region13: #{fish_forward.1} parent=0 // pred_fallthru
    _

</llo_original>
